<compile_context>
chip_gen: v7x
topology: tpu7x:2x2x1
jax: 0.10.0
libtpu: 0.0.40
codegen_flags: <defaults>
</compile_context>

<pallas_src>
import jax
import jax.numpy as jnp
from jax.experimental import pallas as pl
from jax.experimental.pallas import tpu as pltpu

LN_EPS = 1e-5       # PyTorch nn.LayerNorm default eps
MERGE_EPS = 1e-8    # SequenceMergingSeq denominator eps


def _layer_norm(x, gamma, beta):
    mu = jnp.mean(x, axis=-1, keepdims=True)
    var = jnp.mean((x - mu) ** 2, axis=-1, keepdims=True)
    return (x - mu) * jax.lax.rsqrt(var + LN_EPS) * gamma + beta


def encoder_kernel(x_hbm, tm_ref, w_ref, b_ref, ln_ref, out_ref, x_vmem):
    b = pl.program_id(0)
    layer = pl.program_id(1)
    num_layers = pl.num_programs(1)

    bt, S, D = x_vmem.shape
    M = bt * S

    # Load this batch tile's embeddings into the persistent VMEM carry exactly
    # once (layer 0). The embeddings input is memory_space=pl.ANY, so it is not
    # auto double-buffered on top of this scratch.
    @pl.when(layer == 0)
    def _():
        pltpu.sync_copy(x_hbm.at[pl.ds(b * bt, bt)], x_vmem)

    x = x_vmem[...].reshape(M, D)                     # (M, D) f32, free reshape

    tm = tm_ref[0]                                    # (1, D)
    w = w_ref[0]                                      # (D, 2D) bf16 (Wr | Wv)
    bias = b_ref[0]                                   # (1, 2D) f32
    ln = ln_ref[0]                                    # (4, D): ln1_g, ln1_b, ln2_g, ln2_b

    # Shift(x, x_prev=None) is the identity.
    shifted = x

    # ---- SequenceMergingSeq: two linear recurrences over the seq axis ----
    #   a_t = mean_d(decay_t) * a_{t-1} + sum_d(exp_t)        (rank-1 in D)
    #   b_t = decay_t         * b_{t-1} + exp_t * x_t         (full width)
    # NOTE: jnp.exp with no max-subtraction, matching the PyTorch reference;
    # numerically fragile for large activations, kept for fidelity.
    decay = jax.nn.sigmoid(shifted * tm)              # (M, D)
    exp_c = jnp.exp(shifted)                          # (M, D)
    num = exp_c * shifted                             # hoisted out of the scan
    dm = jnp.mean(decay, axis=1, keepdims=True)       # (M, 1)
    es = jnp.sum(exp_c, axis=1, keepdims=True)        # (M, 1)

    # Within-sequence timestep index of each flattened (batch, seq) row.
    t_seq = jax.lax.broadcasted_iota(jnp.int32, (bt, S, 1), 1).reshape(M, 1)

    def shifted_prev(v, off, fill):
        # v[r - off] for rows with t >= off, else `fill`. pltpu.roll sits in the
        # (otherwise idle) XLU slot; rows whose source wraps across a
        # sequence/batch boundary are masked off by the t_seq test, so the
        # (bt, S) -> M flattening is safe.
        rolled = pltpu.roll(v, shift=off, axis=0)
        return jnp.where(t_seq >= off, rolled, fill)

    # Log-depth (Hillis-Steele) scan composing affine maps (d, n):
    #   new_n[t] = d[t] * n[t - off] + n[t];   new_d[t] = d[t] * d[t - off]
    # The narrow a-recurrence runs separately instead of being broadcast to D.
    # TODO(synk): for S >~ 128 switch to a two-level (blocked) scan to cut the
    # log2(S) full-slab passes down to ~2x serial work.
    d_b, n_b = decay, num                             # (M, D) each
    d_a, n_a = dm, es                                 # (M, 1) each
    off = 1
    while off < S:                                    # ceil(log2(S)) steps
        n_b = d_b * shifted_prev(n_b, off, 0.0) + n_b
        d_b = d_b * shifted_prev(d_b, off, 1.0)
        n_a = d_a * shifted_prev(n_a, off, 0.0) + n_a
        d_a = d_a * shifted_prev(d_a, off, 1.0)
        off *= 2

    merged = n_b * pl.reciprocal(n_a + MERGE_EPS, approx=True)   # (M, D)
    merged = _layer_norm(merged, ln[0:1, :], ln[1:2, :])

    # ---- StateCoupling: one fused bf16 MXU matmul for Wr and Wv ----
    proj = jnp.dot(merged.astype(jnp.bfloat16), w,
                   preferred_element_type=jnp.float32) + bias    # (M, 2D) f32
    gate_pre = proj[:, :D]                            # lane-aligned split (D % 128 == 0)
    value = proj[:, D:]
    coupled = _layer_norm(jax.nn.sigmoid(gate_pre) * value,
                          ln[2:3, :], ln[3:4, :])

    x_new = (shifted + coupled).reshape(bt, S, D)     # residual
    x_vmem[...] = x_new

    @pl.when(layer == num_layers - 1)
    def _():
        out_ref[...] = jnp.mean(x_new, axis=1, keepdims=True)    # (bt, 1, D)


def pack_params(params):
    """One-time packing of per-layer weights (hoisted out of the forward)."""
    L, D = params['time_mod'].shape
    # Fuse Wr/Wv into (in, out) layout -> single MXU matmul, no in-kernel
    # transpose; bf16 halves weight DMA bytes (f32 accumulation on the MXU).
    w_fused = jnp.concatenate(
        [jnp.swapaxes(params['wr'], 1, 2), jnp.swapaxes(params['wv'], 1, 2)],
        axis=2).astype(jnp.bfloat16)                                 # (L, D, 2D)
    b_fused = jnp.concatenate([params['br'], params['bv']],
                              axis=1).reshape(L, 1, 2 * D)           # (L, 1, 2D)
    tm = params['time_mod'].reshape(L, 1, D)                         # (L, 1, D)
    ln = jnp.stack([params['ln1_g'], params['ln1_b'],
                    params['ln2_g'], params['ln2_b']], axis=1)       # (L, 4, D)
    return dict(embedding=params['embedding'], tm=tm, w=w_fused,
                b=b_fused, ln=ln)


def _num_tensorcores():
    """Best-effort TensorCore count per chip; falls back to 1 (v5e/v6e)."""
    try:
        info = pltpu.get_tpu_info()
        for attr in ("num_cores", "num_tensorcores", "tensorcores_per_chip",
                     "cores_per_chip"):
            n = getattr(info, attr, None)
            if n:
                return int(n)
    except Exception:
        pass
    return 1


def attention_stream_encoder(tokens, packed):
    # Embedding lookup (gather) is glue, done in plain JAX outside the kernel.
    emb = packed['embedding'][tokens].astype(jnp.float32)            # (B, S, D)
    B, S, D = emb.shape
    L = packed['tm'].shape[0]

    # Batch tiling: nb=1 on single-TC chips (avoid 2x weight DMA + starved MXU),
    # nb = #TensorCores on multi-core chips so the "parallel" axis feeds both.
    n_tc = _num_tensorcores()
    nb = n_tc if (n_tc > 1 and B % n_tc == 0) else 1
    bt = B // nb
    # Split further only if the resident activation tile would blow VMEM.
    act_budget = 24 << 20
    while bt % 2 == 0 and bt * S * D * 4 > act_budget:
        nb *= 2
        bt //= 2

    # Explicit scoped-VMEM limit sized from the footprint (+ headroom), capped
    # at 64 MiB so the same sizing is safe on v7x's smaller per-TC VMEM.
    x_bytes = bt * S * D * 4                                   # resident carry
    w_bytes = 2 * (D * 2 * D * 2 + (2 * D + 5 * D) * 4)        # dbl-buffered weights
    scan_bytes = 8 * x_bytes                                   # scan temporaries
    vmem_limit = int(min(max(x_bytes + w_bytes + scan_bytes + (8 << 20),
                             32 << 20), 64 << 20))

    out = pl.pallas_call(
        encoder_kernel,
        out_shape=jax.ShapeDtypeStruct((B, 1, D), jnp.float32),
        grid_spec=pltpu.PrefetchScalarGridSpec(
            num_scalar_prefetch=0,
            grid=(nb, L),
            in_specs=[
                # Embeddings stay in HBM; copied once per batch tile in-kernel
                # (no auto double-buffer duplicating the VMEM carry).
                pl.BlockSpec(memory_space=pl.ANY),
                pl.BlockSpec((1, 1, D), lambda b, l: (l, 0, 0)),       # time_mod
                pl.BlockSpec((1, D, 2 * D), lambda b, l: (l, 0, 0)),   # fused Wr|Wv
                pl.BlockSpec((1, 1, 2 * D), lambda b, l: (l, 0, 0)),   # fused br|bv
                pl.BlockSpec((1, 4, D), lambda b, l: (l, 0, 0)),       # LN params
            ],
            out_specs=pl.BlockSpec((bt, 1, D), lambda b, l: (b, 0, 0)),
            scratch_shapes=[pltpu.VMEM((bt, S, D), jnp.float32)],      # carried x
        ),
        compiler_params=pltpu.CompilerParams(
            dimension_semantics=("parallel", "arbitrary"),
            vmem_limit_bytes=vmem_limit),
    )(emb, packed['tm'], packed['w'], packed['b'], packed['ln'])
    return out.reshape(B, D)


def init_params(key, vocab_size, embedding_dim, num_layers):
    D = embedding_dim
    k_emb, k_wr, k_br, k_wv, k_bv = jax.random.split(key, 5)
    scale = 1.0 / jnp.sqrt(D).astype(jnp.float32)
    return dict(
        embedding=jax.random.normal(k_emb, (vocab_size, D), jnp.float32),
        time_mod=jnp.full((num_layers, D), 0.5, jnp.float32),
        wr=jax.random.uniform(k_wr, (num_layers, D, D), jnp.float32, -scale, scale),
        br=jax.random.uniform(k_br, (num_layers, D), jnp.float32, -scale, scale),
        wv=jax.random.uniform(k_wv, (num_layers, D, D), jnp.float32, -scale, scale),
        bv=jax.random.uniform(k_bv, (num_layers, D), jnp.float32, -scale, scale),
        ln1_g=jnp.ones((num_layers, D), jnp.float32),
        ln1_b=jnp.zeros((num_layers, D), jnp.float32),
        ln2_g=jnp.ones((num_layers, D), jnp.float32),
        ln2_b=jnp.zeros((num_layers, D), jnp.float32),
    )


def reference_forward(tokens, params, mxu_dtype=jnp.float32):
    """Plain-JAX mirror of the PyTorch forward (sequential recurrence)."""
    x = params['embedding'][tokens].astype(jnp.float32)
    B, S, D = x.shape
    L = params['time_mod'].shape[0]
    for l in range(L):
        shifted = x                                   # Shift(x, None) == x
        decay = jax.nn.sigmoid(shifted * params['time_mod'][l])
        exp_c = jnp.exp(shifted)
        dm = jnp.mean(decay, axis=2, keepdims=True)
        es = jnp.sum(exp_c, axis=2, keepdims=True)
        a = jnp.zeros((B, 1), jnp.float32)
        b = jnp.zeros((B, D), jnp.float32)
        outs = []
        for t in range(S):
            a = dm[:, t, :] * a + es[:, t, :]
            b = decay[:, t, :] * b + exp_c[:, t, :] * shifted[:, t, :]
            outs.append(b / (a + MERGE_EPS))
        merged = _layer_norm(jnp.stack(outs, axis=1),
                             params['ln1_g'][l], params['ln1_b'][l])
        m = merged.astype(mxu_dtype)
        wr = params['wr'][l].astype(mxu_dtype)
        wv = params['wv'][l].astype(mxu_dtype)
        gate = jax.nn.sigmoid(
            jnp.einsum('bsd,od->bso', m, wr, preferred_element_type=jnp.float32,
                       precision=jax.lax.Precision.HIGHEST) + params['br'][l])
        value = jnp.einsum('bsd,od->bso', m, wv, preferred_element_type=jnp.float32,
                           precision=jax.lax.Precision.HIGHEST) + params['bv'][l]
        coupled = _layer_norm(gate * value, params['ln2_g'][l], params['ln2_b'][l])
        x = shifted + coupled
    return jnp.mean(x, axis=1)


if __name__ == "__main__":
    vocab_size, embedding_dim, num_layers = 3, 128, 2
    batch, seq = 2, 8

    key = jax.random.PRNGKey(0)
    k_tok, k_par = jax.random.split(key)
    tokens = jax.random.randint(k_tok, (batch, seq), 0, vocab_size, dtype=jnp.int32)
    params = init_params(k_par, vocab_size, embedding_dim, num_layers)
    packed = pack_params(params)          # hoisted one-time weight packing

    out = jax.block_until_ready(attention_stream_encoder(tokens, packed))
    assert out.shape == (batch, embedding_dim)

    # Check vs a reference that mirrors the kernel's bf16 MXU inputs
    # (slack covers approx reciprocal + scan reassociation).
    ref_bf16 = reference_forward(tokens, params, mxu_dtype=jnp.bfloat16)
    assert jnp.allclose(out, ref_bf16, atol=2e-2, rtol=2e-2), (
        f"max abs diff vs bf16 ref: {jnp.max(jnp.abs(out - ref_bf16))}")

    # Looser check vs the pure-f32 PyTorch-equivalent reference.
    ref_f32 = reference_forward(tokens, params, mxu_dtype=jnp.float32)
    assert jnp.allclose(out, ref_f32, atol=5e-2, rtol=5e-2), (
        f"max abs diff vs f32 ref: {jnp.max(jnp.abs(out - ref_f32))}")

    print("KERNEL_OK")
</pallas_src>

<mosaic_0001>
module attributes {stable_mosaic.version = 11 : i64} {
  func.func @encoder_kernel(%arg0: i32, %arg1: i32, %arg2: memref<2x8x128xf32, #tpu.memory_space<any>>, %arg3: memref<1x1x128xf32, #tpu.memory_space<vmem>>, %arg4: memref<1x128x256xbf16, #tpu.memory_space<vmem>>, %arg5: memref<1x1x256xf32, #tpu.memory_space<vmem>>, %arg6: memref<1x4x128xf32, #tpu.memory_space<vmem>>, %arg7: memref<2x1x128xf32, #tpu.memory_space<vmem>>, %arg8: memref<2x8x128xf32, #tpu.memory_space<vmem>>) attributes {dimension_semantics = [#tpu.dimension_semantics<parallel>, #tpu.dimension_semantics<arbitrary>], iteration_bounds = array<i64: 1, 2>, scalar_prefetch = 0 : i64, scratch_operands = 1 : i64, tpu.core_type = #tpu.core_type<tc>, window_params = [{}, {transform_indices = @transform_1, window_bounds = array<i64: 1, 1, 128>}, {transform_indices = @transform_2, window_bounds = array<i64: 1, 128, 256>}, {transform_indices = @transform_3, window_bounds = array<i64: 1, 1, 256>}, {transform_indices = @transform_4, window_bounds = array<i64: 1, 4, 128>}, {transform_indices = @transform_5, window_bounds = array<i64: 2, 1, 128>}]} {
    %c0_i32 = arith.constant 0 : i32
    %0 = arith.cmpi eq, %arg1, %c0_i32 : i32
    %1 = arith.extui %0 : i1 to i32
    %c0_i32_0 = arith.constant 0 : i32
    %2 = arith.cmpi ne, %1, %c0_i32_0 : i32
    scf.if %2 {
      %c2_i32_63 = arith.constant 2 : i32
      %177 = arith.muli %arg0, %c2_i32_63 : i32
      "tpu.region"() ({
        %178 = tpu.sem_alloc : memref<!tpu.dma_semaphore, #tpu.memory_space<semaphore_mem>>
        %c0_i32_64 = arith.constant 0 : i32
        %c0_i32_65 = arith.constant 0 : i32
        %179 = tpu.memref_slice %arg2[%177, %c0_i32_64, %c0_i32_65] : memref<2x8x128xf32, #tpu.memory_space<any>> -> memref<2x8x128xf32, #tpu.memory_space<any>>
        tpu.enqueue_dma source(%179 : memref<2x8x128xf32, #tpu.memory_space<any>>) target(%arg8 : memref<2x8x128xf32, #tpu.memory_space<vmem>>) target_semaphore(%178 : memref<!tpu.dma_semaphore, #tpu.memory_space<semaphore_mem>>)
        %c0_i32_66 = arith.constant 0 : i32
        %c0_i32_67 = arith.constant 0 : i32
        %180 = tpu.memref_slice %arg2[%177, %c0_i32_66, %c0_i32_67] : memref<2x8x128xf32, #tpu.memory_space<any>> -> memref<2x8x128xf32, #tpu.memory_space<any>>
        tpu.wait_dma2 semaphore(%178 : memref<!tpu.dma_semaphore, #tpu.memory_space<semaphore_mem>>) src(%180 : memref<2x8x128xf32, #tpu.memory_space<any>>) dst(%arg8 : memref<2x8x128xf32, #tpu.memory_space<vmem>>)
        tpu.yield
      }) : () -> ()
    } else {
    }
    %c0 = arith.constant 0 : index
    %c0_1 = arith.constant 0 : index
    %c0_2 = arith.constant 0 : index
    %3 = vector.load %arg8[%c0, %c0_1, %c0_2] : memref<2x8x128xf32, #tpu.memory_space<vmem>>, vector<2x8x128xf32>
    %4 = vector.shape_cast %3 : vector<2x8x128xf32> to vector<16x128xf32>
    %c0_3 = arith.constant 0 : index
    %c0_4 = arith.constant 0 : index
    %c0_5 = arith.constant 0 : index
    %5 = vector.load %arg3[%c0_3, %c0_4, %c0_5] : memref<1x1x128xf32, #tpu.memory_space<vmem>>, vector<1x1x128xf32>
    %6 = vector.shape_cast %5 : vector<1x1x128xf32> to vector<1x128xf32>
    %c0_6 = arith.constant 0 : index
    %c0_7 = arith.constant 0 : index
    %c0_8 = arith.constant 0 : index
    %7 = vector.load %arg4[%c0_6, %c0_7, %c0_8] : memref<1x128x256xbf16, #tpu.memory_space<vmem>>, vector<1x128x256xbf16>
    %8 = vector.shape_cast %7 : vector<1x128x256xbf16> to vector<128x256xbf16>
    %c0_9 = arith.constant 0 : index
    %c0_10 = arith.constant 0 : index
    %c0_11 = arith.constant 0 : index
    %9 = vector.load %arg5[%c0_9, %c0_10, %c0_11] : memref<1x1x256xf32, #tpu.memory_space<vmem>>, vector<1x1x256xf32>
    %10 = vector.shape_cast %9 : vector<1x1x256xf32> to vector<1x256xf32>
    %c0_12 = arith.constant 0 : index
    %c0_13 = arith.constant 0 : index
    %c0_14 = arith.constant 0 : index
    %11 = vector.load %arg6[%c0_12, %c0_13, %c0_14] : memref<1x4x128xf32, #tpu.memory_space<vmem>>, vector<1x4x128xf32>
    %12 = vector.shape_cast %11 : vector<1x4x128xf32> to vector<4x128xf32>
    %13 = vector.broadcast %6 : vector<1x128xf32> to vector<16x128xf32>
    %14 = arith.mulf %4, %13 : vector<16x128xf32>
    %15 = arith.negf %14 : vector<16x128xf32>
    %16 = math.exp %15 : vector<16x128xf32>
    %cst = arith.constant 1.000000e+00 : f32
    %17 = vector.broadcast %cst : f32 to vector<16x128xf32>
    %18 = arith.addf %17, %16 : vector<16x128xf32>
    %19 = arith.divf %17, %18 : vector<16x128xf32>
    %20 = math.exp %4 : vector<16x128xf32>
    %21 = arith.mulf %20, %4 : vector<16x128xf32>
    %cst_15 = arith.constant dense<0.000000e+00> : vector<16xf32>
    %22 = vector.multi_reduction <add>, %19, %cst_15 [1] : vector<16x128xf32> to vector<16xf32>
    %23 = vector.shape_cast %22 : vector<16xf32> to vector<16x1xf32>
    %cst_16 = arith.constant 1.280000e+02 : f32
    %24 = vector.broadcast %cst_16 : f32 to vector<16x1xf32>
    %25 = arith.divf %23, %24 : vector<16x1xf32>
    %cst_17 = arith.constant dense<0.000000e+00> : vector<16xf32>
    %26 = vector.multi_reduction <add>, %20, %cst_17 [1] : vector<16x128xf32> to vector<16xf32>
    %27 = vector.shape_cast %26 : vector<16xf32> to vector<16x1xf32>
    %28 = tpu.iota {dimensions = array<i32: 1>} : vector<2x8x1xi32>
    %29 = vector.shape_cast %28 : vector<2x8x1xi32> to vector<16x1xi32>
    %c1_i32 = arith.constant 1 : i32
    %30 = tpu.dynamic_rotate %21 by %c1_i32 dim 0 : vector<16x128xf32>, i32 -> vector<16x128xf32>
    %c1_i32_18 = arith.constant 1 : i32
    %31 = vector.broadcast %c1_i32_18 : i32 to vector<16x1xi32>
    %32 = arith.cmpi sge, %29, %31 : vector<16x1xi32>
    %cst_19 = arith.constant 0.000000e+00 : f32
    %33 = vector.shape_cast %32 : vector<16x1xi1> to vector<16x1xi1>
    %34 = vector.broadcast %33 : vector<16x1xi1> to vector<16x128xi1>
    %35 = vector.broadcast %cst_19 : f32 to vector<16x128xf32>
    %36 = arith.select %34, %30, %35 : vector<16x128xi1>, vector<16x128xf32>
    %37 = arith.mulf %19, %36 : vector<16x128xf32>
    %38 = arith.addf %37, %21 : vector<16x128xf32>
    %c1_i32_20 = arith.constant 1 : i32
    %39 = tpu.dynamic_rotate %19 by %c1_i32_20 dim 0 : vector<16x128xf32>, i32 -> vector<16x128xf32>
    %c1_i32_21 = arith.constant 1 : i32
    %40 = vector.broadcast %c1_i32_21 : i32 to vector<16x1xi32>
    %41 = arith.cmpi sge, %29, %40 : vector<16x1xi32>
    %cst_22 = arith.constant 1.000000e+00 : f32
    %42 = vector.shape_cast %41 : vector<16x1xi1> to vector<16x1xi1>
    %43 = vector.broadcast %42 : vector<16x1xi1> to vector<16x128xi1>
    %44 = vector.broadcast %cst_22 : f32 to vector<16x128xf32>
    %45 = arith.select %43, %39, %44 : vector<16x128xi1>, vector<16x128xf32>
    %46 = arith.mulf %19, %45 : vector<16x128xf32>
    %c1_i32_23 = arith.constant 1 : i32
    %47 = tpu.dynamic_rotate %27 by %c1_i32_23 dim 0 : vector<16x1xf32>, i32 -> vector<16x1xf32>
    %c1_i32_24 = arith.constant 1 : i32
    %48 = vector.broadcast %c1_i32_24 : i32 to vector<16x1xi32>
    %49 = arith.cmpi sge, %29, %48 : vector<16x1xi32>
    %cst_25 = arith.constant 0.000000e+00 : f32
    %50 = vector.broadcast %cst_25 : f32 to vector<16x1xf32>
    %51 = arith.select %49, %47, %50 : vector<16x1xi1>, vector<16x1xf32>
    %52 = arith.mulf %25, %51 : vector<16x1xf32>
    %53 = arith.addf %52, %27 : vector<16x1xf32>
    %c1_i32_26 = arith.constant 1 : i32
    %54 = tpu.dynamic_rotate %25 by %c1_i32_26 dim 0 : vector<16x1xf32>, i32 -> vector<16x1xf32>
    %c1_i32_27 = arith.constant 1 : i32
    %55 = vector.broadcast %c1_i32_27 : i32 to vector<16x1xi32>
    %56 = arith.cmpi sge, %29, %55 : vector<16x1xi32>
    %cst_28 = arith.constant 1.000000e+00 : f32
    %57 = vector.broadcast %cst_28 : f32 to vector<16x1xf32>
    %58 = arith.select %56, %54, %57 : vector<16x1xi1>, vector<16x1xf32>
    %59 = arith.mulf %25, %58 : vector<16x1xf32>
    %c2_i32 = arith.constant 2 : i32
    %60 = tpu.dynamic_rotate %38 by %c2_i32 dim 0 : vector<16x128xf32>, i32 -> vector<16x128xf32>
    %c2_i32_29 = arith.constant 2 : i32
    %61 = vector.broadcast %c2_i32_29 : i32 to vector<16x1xi32>
    %62 = arith.cmpi sge, %29, %61 : vector<16x1xi32>
    %cst_30 = arith.constant 0.000000e+00 : f32
    %63 = vector.shape_cast %62 : vector<16x1xi1> to vector<16x1xi1>
    %64 = vector.broadcast %63 : vector<16x1xi1> to vector<16x128xi1>
    %65 = vector.broadcast %cst_30 : f32 to vector<16x128xf32>
    %66 = arith.select %64, %60, %65 : vector<16x128xi1>, vector<16x128xf32>
    %67 = arith.mulf %46, %66 : vector<16x128xf32>
    %68 = arith.addf %67, %38 : vector<16x128xf32>
    %c2_i32_31 = arith.constant 2 : i32
    %69 = tpu.dynamic_rotate %46 by %c2_i32_31 dim 0 : vector<16x128xf32>, i32 -> vector<16x128xf32>
    %c2_i32_32 = arith.constant 2 : i32
    %70 = vector.broadcast %c2_i32_32 : i32 to vector<16x1xi32>
    %71 = arith.cmpi sge, %29, %70 : vector<16x1xi32>
    %cst_33 = arith.constant 1.000000e+00 : f32
    %72 = vector.shape_cast %71 : vector<16x1xi1> to vector<16x1xi1>
    %73 = vector.broadcast %72 : vector<16x1xi1> to vector<16x128xi1>
    %74 = vector.broadcast %cst_33 : f32 to vector<16x128xf32>
    %75 = arith.select %73, %69, %74 : vector<16x128xi1>, vector<16x128xf32>
    %76 = arith.mulf %46, %75 : vector<16x128xf32>
    %c2_i32_34 = arith.constant 2 : i32
    %77 = tpu.dynamic_rotate %53 by %c2_i32_34 dim 0 : vector<16x1xf32>, i32 -> vector<16x1xf32>
    %c2_i32_35 = arith.constant 2 : i32
    %78 = vector.broadcast %c2_i32_35 : i32 to vector<16x1xi32>
    %79 = arith.cmpi sge, %29, %78 : vector<16x1xi32>
    %cst_36 = arith.constant 0.000000e+00 : f32
    %80 = vector.broadcast %cst_36 : f32 to vector<16x1xf32>
    %81 = arith.select %79, %77, %80 : vector<16x1xi1>, vector<16x1xf32>
    %82 = arith.mulf %59, %81 : vector<16x1xf32>
    %83 = arith.addf %82, %53 : vector<16x1xf32>
    %c2_i32_37 = arith.constant 2 : i32
    %84 = tpu.dynamic_rotate %59 by %c2_i32_37 dim 0 : vector<16x1xf32>, i32 -> vector<16x1xf32>
    %c2_i32_38 = arith.constant 2 : i32
    %85 = vector.broadcast %c2_i32_38 : i32 to vector<16x1xi32>
    %86 = arith.cmpi sge, %29, %85 : vector<16x1xi32>
    %cst_39 = arith.constant 1.000000e+00 : f32
    %87 = vector.broadcast %cst_39 : f32 to vector<16x1xf32>
    %88 = arith.select %86, %84, %87 : vector<16x1xi1>, vector<16x1xf32>
    %89 = arith.mulf %59, %88 : vector<16x1xf32>
    %c4_i32 = arith.constant 4 : i32
    %90 = tpu.dynamic_rotate %68 by %c4_i32 dim 0 : vector<16x128xf32>, i32 -> vector<16x128xf32>
    %c4_i32_40 = arith.constant 4 : i32
    %91 = vector.broadcast %c4_i32_40 : i32 to vector<16x1xi32>
    %92 = arith.cmpi sge, %29, %91 : vector<16x1xi32>
    %cst_41 = arith.constant 0.000000e+00 : f32
    %93 = vector.shape_cast %92 : vector<16x1xi1> to vector<16x1xi1>
    %94 = vector.broadcast %93 : vector<16x1xi1> to vector<16x128xi1>
    %95 = vector.broadcast %cst_41 : f32 to vector<16x128xf32>
    %96 = arith.select %94, %90, %95 : vector<16x128xi1>, vector<16x128xf32>
    %97 = arith.mulf %76, %96 : vector<16x128xf32>
    %98 = arith.addf %97, %68 : vector<16x128xf32>
    %c4_i32_42 = arith.constant 4 : i32
    %99 = tpu.dynamic_rotate %83 by %c4_i32_42 dim 0 : vector<16x1xf32>, i32 -> vector<16x1xf32>
    %c4_i32_43 = arith.constant 4 : i32
    %100 = vector.broadcast %c4_i32_43 : i32 to vector<16x1xi32>
    %101 = arith.cmpi sge, %29, %100 : vector<16x1xi32>
    %cst_44 = arith.constant 0.000000e+00 : f32
    %102 = vector.broadcast %cst_44 : f32 to vector<16x1xf32>
    %103 = arith.select %101, %99, %102 : vector<16x1xi1>, vector<16x1xf32>
    %104 = arith.mulf %89, %103 : vector<16x1xf32>
    %105 = arith.addf %104, %83 : vector<16x1xf32>
    %cst_45 = arith.constant 9.99999993E-9 : f32
    %106 = vector.broadcast %cst_45 : f32 to vector<16x1xf32>
    %107 = arith.addf %105, %106 : vector<16x1xf32>
    %108 = tpu.reciprocal %107 {approx = true} : vector<16x1xf32> -> vector<16x1xf32>
    %109 = vector.broadcast %108 : vector<16x1xf32> to vector<16x128xf32>
    %110 = arith.mulf %98, %109 : vector<16x128xf32>
    %111 = vector.extract_strided_slice %12 {offsets = [0, 0], sizes = [1, 128], strides = [1, 1]} : vector<4x128xf32> to vector<1x128xf32>
    %112 = vector.extract_strided_slice %12 {offsets = [1, 0], sizes = [1, 128], strides = [1, 1]} : vector<4x128xf32> to vector<1x128xf32>
    %cst_46 = arith.constant dense<0.000000e+00> : vector<16xf32>
    %113 = vector.multi_reduction <add>, %110, %cst_46 [1] : vector<16x128xf32> to vector<16xf32>
    %114 = vector.shape_cast %113 : vector<16xf32> to vector<16x1xf32>
    %cst_47 = arith.constant 1.280000e+02 : f32
    %115 = vector.broadcast %cst_47 : f32 to vector<16x1xf32>
    %116 = arith.divf %114, %115 : vector<16x1xf32>
    %117 = vector.broadcast %116 : vector<16x1xf32> to vector<16x128xf32>
    %118 = arith.subf %110, %117 : vector<16x128xf32>
    %119 = arith.mulf %118, %118 : vector<16x128xf32>
    %cst_48 = arith.constant dense<0.000000e+00> : vector<16xf32>
    %120 = vector.multi_reduction <add>, %119, %cst_48 [1] : vector<16x128xf32> to vector<16xf32>
    %121 = vector.shape_cast %120 : vector<16xf32> to vector<16x1xf32>
    %cst_49 = arith.constant 1.280000e+02 : f32
    %122 = vector.broadcast %cst_49 : f32 to vector<16x1xf32>
    %123 = arith.divf %121, %122 : vector<16x1xf32>
    %124 = vector.broadcast %116 : vector<16x1xf32> to vector<16x128xf32>
    %125 = arith.subf %110, %124 : vector<16x128xf32>
    %cst_50 = arith.constant 9.99999974E-6 : f32
    %126 = vector.broadcast %cst_50 : f32 to vector<16x1xf32>
    %127 = arith.addf %123, %126 : vector<16x1xf32>
    %128 = math.rsqrt %127 : vector<16x1xf32>
    %129 = vector.broadcast %128 : vector<16x1xf32> to vector<16x128xf32>
    %130 = arith.mulf %125, %129 : vector<16x128xf32>
    %131 = vector.broadcast %111 : vector<1x128xf32> to vector<16x128xf32>
    %132 = arith.mulf %130, %131 : vector<16x128xf32>
    %133 = vector.broadcast %112 : vector<1x128xf32> to vector<16x128xf32>
    %134 = arith.addf %132, %133 : vector<16x128xf32>
    %135 = arith.truncf %134 : vector<16x128xf32> to vector<16x128xbf16>
    %cst_51 = arith.constant dense<0.000000e+00> : vector<16x256xf32>
    %136 = tpu.matmul %135, %8, %cst_51 {dimension_numbers = #tpu.dot_dimension_numbers<[1], [0], [0], [1], [0, 0, 1, 1], [], []>} : vector<16x128xbf16>, vector<128x256xbf16>, vector<16x256xf32> -> vector<16x256xf32>
    %137 = vector.broadcast %10 : vector<1x256xf32> to vector<16x256xf32>
    %138 = arith.addf %136, %137 : vector<16x256xf32>
    %139 = vector.extract_strided_slice %138 {offsets = [0, 0], sizes = [16, 128], strides = [1, 1]} : vector<16x256xf32> to vector<16x128xf32>
    %140 = vector.extract_strided_slice %138 {offsets = [0, 128], sizes = [16, 128], strides = [1, 1]} : vector<16x256xf32> to vector<16x128xf32>
    %141 = arith.negf %139 : vector<16x128xf32>
    %142 = math.exp %141 : vector<16x128xf32>
    %cst_52 = arith.constant 1.000000e+00 : f32
    %143 = vector.broadcast %cst_52 : f32 to vector<16x128xf32>
    %144 = arith.addf %143, %142 : vector<16x128xf32>
    %145 = arith.divf %143, %144 : vector<16x128xf32>
    %146 = arith.mulf %145, %140 : vector<16x128xf32>
    %147 = vector.extract_strided_slice %12 {offsets = [2, 0], sizes = [1, 128], strides = [1, 1]} : vector<4x128xf32> to vector<1x128xf32>
    %148 = vector.extract_strided_slice %12 {offsets = [3, 0], sizes = [1, 128], strides = [1, 1]} : vector<4x128xf32> to vector<1x128xf32>
    %cst_53 = arith.constant dense<0.000000e+00> : vector<16xf32>
    %149 = vector.multi_reduction <add>, %146, %cst_53 [1] : vector<16x128xf32> to vector<16xf32>
    %150 = vector.shape_cast %149 : vector<16xf32> to vector<16x1xf32>
    %cst_54 = arith.constant 1.280000e+02 : f32
    %151 = vector.broadcast %cst_54 : f32 to vector<16x1xf32>
    %152 = arith.divf %150, %151 : vector<16x1xf32>
    %153 = vector.broadcast %152 : vector<16x1xf32> to vector<16x128xf32>
    %154 = arith.subf %146, %153 : vector<16x128xf32>
    %155 = arith.mulf %154, %154 : vector<16x128xf32>
    %cst_55 = arith.constant dense<0.000000e+00> : vector<16xf32>
    %156 = vector.multi_reduction <add>, %155, %cst_55 [1] : vector<16x128xf32> to vector<16xf32>
    %157 = vector.shape_cast %156 : vector<16xf32> to vector<16x1xf32>
    %cst_56 = arith.constant 1.280000e+02 : f32
    %158 = vector.broadcast %cst_56 : f32 to vector<16x1xf32>
    %159 = arith.divf %157, %158 : vector<16x1xf32>
    %160 = vector.broadcast %152 : vector<16x1xf32> to vector<16x128xf32>
    %161 = arith.subf %146, %160 : vector<16x128xf32>
    %cst_57 = arith.constant 9.99999974E-6 : f32
    %162 = vector.broadcast %cst_57 : f32 to vector<16x1xf32>
    %163 = arith.addf %159, %162 : vector<16x1xf32>
    %164 = math.rsqrt %163 : vector<16x1xf32>
    %165 = vector.broadcast %164 : vector<16x1xf32> to vector<16x128xf32>
    %166 = arith.mulf %161, %165 : vector<16x128xf32>
    %167 = vector.broadcast %147 : vector<1x128xf32> to vector<16x128xf32>
    %168 = arith.mulf %166, %167 : vector<16x128xf32>
    %169 = vector.broadcast %148 : vector<1x128xf32> to vector<16x128xf32>
    %170 = arith.addf %168, %169 : vector<16x128xf32>
    %171 = arith.addf %4, %170 : vector<16x128xf32>
    %172 = vector.shape_cast %171 : vector<16x128xf32> to vector<2x8x128xf32>
    %c0_58 = arith.constant 0 : index
    %c0_59 = arith.constant 0 : index
    %c0_60 = arith.constant 0 : index
    %173 = vector.load %arg8[%c0_58, %c0_59, %c0_60] : memref<2x8x128xf32, #tpu.memory_space<vmem>>, vector<2x8x128xf32>
    tpu.vector_store %arg8[%c0_58, %c0_59, %c0_60], %172 {strides = array<i32>} : memref<2x8x128xf32, #tpu.memory_space<vmem>>, vector<2x8x128xf32>,
    %c1_i32_61 = arith.constant 1 : i32
    %174 = arith.cmpi eq, %arg1, %c1_i32_61 : i32
    %175 = arith.extui %174 : i1 to i32
    %c0_i32_62 = arith.constant 0 : i32
    %176 = arith.cmpi ne, %175, %c0_i32_62 : i32
    scf.if %176 {
      %cst_63 = arith.constant dense<0.000000e+00> : vector<2x128xf32>
      %177 = vector.multi_reduction <add>, %172, %cst_63 [1] : vector<2x8x128xf32> to vector<2x128xf32>
      %178 = vector.shape_cast %177 : vector<2x128xf32> to vector<2x1x128xf32>
      %cst_64 = arith.constant 8.000000e+00 : f32
      %179 = vector.broadcast %cst_64 : f32 to vector<2x1x128xf32>
      %180 = arith.divf %178, %179 : vector<2x1x128xf32>
      %c0_65 = arith.constant 0 : index
      %c0_66 = arith.constant 0 : index
      %c0_67 = arith.constant 0 : index
      %181 = vector.load %arg7[%c0_65, %c0_66, %c0_67] : memref<2x1x128xf32, #tpu.memory_space<vmem>>, vector<2x1x128xf32>
      tpu.vector_store %arg7[%c0_65, %c0_66, %c0_67], %180 {strides = array<i32>} : memref<2x1x128xf32, #tpu.memory_space<vmem>>, vector<2x1x128xf32>,
    } else {
    }
    return
  }
  func.func @transform_1(%arg0: i32, %arg1: i32) -> (i32, i32, i32) {
    %c0_i32 = arith.constant 0 : i32
    %c0_i32_0 = arith.constant 0 : i32
    %c0_i32_1 = arith.constant 0 : i32
    return %arg1, %c0_i32, %c0_i32_0 : i32, i32, i32
  }
  func.func @transform_2(%arg0: i32, %arg1: i32) -> (i32, i32, i32) {
    %c0_i32 = arith.constant 0 : i32
    %c0_i32_0 = arith.constant 0 : i32
    %c0_i32_1 = arith.constant 0 : i32
    return %arg1, %c0_i32, %c0_i32_0 : i32, i32, i32
  }
  func.func @transform_3(%arg0: i32, %arg1: i32) -> (i32, i32, i32) {
    %c0_i32 = arith.constant 0 : i32
    %c0_i32_0 = arith.constant 0 : i32
    %c0_i32_1 = arith.constant 0 : i32
    return %arg1, %c0_i32, %c0_i32_0 : i32, i32, i32
  }
  func.func @transform_4(%arg0: i32, %arg1: i32) -> (i32, i32, i32) {
    %c0_i32 = arith.constant 0 : i32
    %c0_i32_0 = arith.constant 0 : i32
    %c0_i32_1 = arith.constant 0 : i32
    return %arg1, %c0_i32, %c0_i32_0 : i32, i32, i32
  }
  func.func @transform_5(%arg0: i32, %arg1: i32) -> (i32, i32, i32) {
    %c0_i32 = arith.constant 0 : i32
    %c0_i32_0 = arith.constant 0 : i32
    %c0_i32_1 = arith.constant 0 : i32
    return %arg0, %c0_i32, %c0_i32_0 : i32, i32, i32
  }
}

</mosaic_0001>

<llo_original>
// kernel: tpu_custom_call.1
$region0: #{tpu_custom_call.1}
  #allocation0 [shape = 'u32[]', space=smem, size = 0x4, offset = 0x4, fixed_abs, tag = 'smem constant byte address 0x4 - core index']
  #allocation1 [shape = 'u32[144,128]{1,0:T(1,128)}', space=vmem, size = 0x12000, scoped, tag = 'internal scratch']
  #allocation2 [shape = 'f32[2,8,128]{2,1,0:T(8,128)}', space=vmem, size = 0x2000, scoped, tag = 'scratch operand']
  #allocation8 [shape = 's32[]', space=sflag, size = 0x4, offset = 0, fixed_abs, tag = 'sflag constant byte address 0x0 - dummy sync flag']
  #allocation9 [shape = 's32[]', space=sflag, size = 0x4, offset = 0, fixed_abs, tag = 'sflag constant byte address 0x0 - dummy sync flag']
  #allocation10 [shape = 'u32[]', space=smem, size = 0x4, offset = 0x44, fixed_abs, tag = 'smem constant byte address 0x44 - assertion arg 0']
  #allocation11 [shape = 'u32[]', space=smem, size = 0x4, offset = 0x48, fixed_abs, tag = 'smem constant byte address 0x48 - assertion arg 1']
  %s0 = inlined_call_operand.hbm [shape: f32[2,8,128], index: 0, kind: input, shape index: {}]
  %s1 = inlined_call_operand.vmem [shape: f32[2,1,128], index: 1, kind: input, shape index: {}]
  %s2 = inlined_call_operand.hbm [shape: bf16[2,128,256], index: 2, kind: input, shape index: {}]
  %s3 = inlined_call_operand.vmem [shape: f32[2,1,256], index: 3, kind: input, shape index: {}]
  %s4 = inlined_call_operand.vmem [shape: f32[2,4,128], index: 4, kind: input, shape index: {}]
  %s5 = inlined_call_operand.hbm [shape: f32[2,1,128], index: 5, kind: output, shape index: {}]
  %s6 = sld [smem:[#allocation0]]
  $region66: #{tpu_custom_call.1} parent=0
    _
  %s8 = ssub.s32 1, %s6
  %s9 = scalar_select 0, %s8, %s6
  $region1: #{tpu_custom_call.1} parent=0
    #allocation3 [shape = 'u8[131072]{0}', space=vmem, size = 0x20000, scoped, tag = 'input window, operand 2']
    #allocation4 [shape = 's32[2]{0}', space=sflag, size = 0x8, scoped, tag = 'scoped memory for tpu_custom_call.1']
    #allocation5 [shape = 's32[2]{0}', space=sflag, size = 0x8, scoped, tag = 'scoped memory for tpu_custom_call.1']
    #allocation6 [shape = 'u8[1024]{0}', space=vmem, size = 0x400, scoped, tag = 'output window, operand 0, single buffered']
    %10 = vsyncpa [#allocation4], 0
    %s11 = scalar_lea.sflag [#allocation4], 1
    %12 = vsyncpa %s11, 0
    %13 = vsyncpa [#allocation5], 0
    loop: start=0, step=1, limit=4
    $region2: #{tpu_custom_call.1} parent=1 // loop_pre_header
      _
    $region3: #{tpu_custom_call.1} parent=1 // loop_header
      %s15 = sphi 0, %s19
      %p16 = scmp.ge.s32.totalorder %s15, 4
      %s22 = sphi 0, %s34
      %s23 = sphi 0, %s30
      %s24 = sphi 0, %s22
      %s25 = sphi 0, %s23
      %s26 = sphi 0, %s24
      %s27 = sphi 0, %s25
      %s37 = sphi 0, %s39
      %s40 = sphi 0, %s37
      %s41 = sphi 0, %s40
      %s57 = sphi 0, %s41
      %s63 = sphi 0, %s65
      %s66 = sphi 0, %s63
      %s67 = sphi 0, %s66
      %s83 = sphi 0, %s67
      %s89 = sphi 0, %s91
      %s92 = sphi 0, %s89
      %s93 = sphi 0, %s92
      %s109 = sphi 0, %s93
      %s115 = sphi 0, %s117
      %s118 = sphi 0, %s115
      %s119 = sphi 0, %s118
      %s135 = sphi 0, %s119
      %s141 = sphi 0, %s143
      %s144 = sphi 0, %s141
      %s145 = sphi 0, %s144
      %s161 = sphi 0, %s145
    $region4: #{tpu_custom_call.1} parent=1 // loop_header_branch
      %18 = sbr.rel (%p16) target = $region8
    $region5: #{tpu_custom_call.1} parent=1 // loop_body
      %s20 = ssub.s32 %s15, 1
      %s21 = ssub.s32 %s15, 2
      %s28 = sadd.s32 1, %s23
      %p29 = scmp.ge.s32.totalorder %s28, 2
      %s30 = scalar_select %p29, 0, %s28
      %s31 = sadd.s32 1, %s22
      %s32 = scalar_select %p29, %s31, %s22
      %p33 = scmp.ge.s32.totalorder %s32, 1
      %s34 = scalar_select %p33, 0, %s32
      %s35 = ssub.s32 %s23, %s30
      %p36 = scmp.eq.s32.totalorder %s35, 0
      %s38 = sadd.s32 %s37, 1
      %s39 = scalar_select %p36, %s37, %s38
      %p42 = pneg %p36
      %p43 = scmp.eq.s32.totalorder %s15, 1
      %p44 = por %p42, %p43
      %p45 = scmp.ne.s32.totalorder %s37, %s40
      %p46 = scmp.eq.s32.totalorder %s15, 0
      %p47 = por %p45, %p46
      %p48 = scmp.ne.s32.totalorder %s37, %s40
      %p49 = scmp.eq.s32.totalorder %s20, 1
      %p50 = por %p48, %p49
      %p51 = scmp.ne.s32.totalorder %s40, %s41
      %p52 = scmp.eq.s32.totalorder %s20, 0
      %p53 = por %p51, %p52
      %p54 = scmp.ne.s32.totalorder %s40, %s41
      %p55 = scmp.eq.s32.totalorder %s21, 1
      %p56 = por %p54, %p55
      %p58 = scmp.ne.s32.totalorder %s41, %s57
      %p59 = scmp.eq.s32.totalorder %s21, 0
      %p60 = por %p58, %p59
      %s61 = ssub.s32 %s23, %s30
      %p62 = scmp.eq.s32.totalorder %s61, 0
      %s64 = sadd.s32 %s63, 1
      %s65 = scalar_select %p62, %s63, %s64
      %p68 = pneg %p62
      %p69 = scmp.eq.s32.totalorder %s15, 1
      %p70 = por %p68, %p69
      %p71 = scmp.ne.s32.totalorder %s63, %s66
      %p72 = scmp.eq.s32.totalorder %s15, 0
      %p73 = por %p71, %p72
      %p74 = scmp.ne.s32.totalorder %s63, %s66
      %p75 = scmp.eq.s32.totalorder %s20, 1
      %p76 = por %p74, %p75
      %p77 = scmp.ne.s32.totalorder %s66, %s67
      %p78 = scmp.eq.s32.totalorder %s20, 0
      %p79 = por %p77, %p78
      %p80 = scmp.ne.s32.totalorder %s66, %s67
      %p81 = scmp.eq.s32.totalorder %s21, 1
      %p82 = por %p80, %p81
      %p84 = scmp.ne.s32.totalorder %s67, %s83
      %p85 = scmp.eq.s32.totalorder %s21, 0
      %p86 = por %p84, %p85
      %s87 = ssub.s32 %s23, %s30
      %p88 = scmp.eq.s32.totalorder %s87, 0
      %s90 = sadd.s32 %s89, 1
      %s91 = scalar_select %p88, %s89, %s90
      %p94 = pneg %p88
      %p95 = scmp.eq.s32.totalorder %s15, 1
      %p96 = por %p94, %p95
      %p97 = scmp.ne.s32.totalorder %s89, %s92
      %p98 = scmp.eq.s32.totalorder %s15, 0
      %p99 = por %p97, %p98
      %p100 = scmp.ne.s32.totalorder %s89, %s92
      %p101 = scmp.eq.s32.totalorder %s20, 1
      %p102 = por %p100, %p101
      %p103 = scmp.ne.s32.totalorder %s92, %s93
      %p104 = scmp.eq.s32.totalorder %s20, 0
      %p105 = por %p103, %p104
      %p106 = scmp.ne.s32.totalorder %s92, %s93
      %p107 = scmp.eq.s32.totalorder %s21, 1
      %p108 = por %p106, %p107
      %p110 = scmp.ne.s32.totalorder %s93, %s109
      %p111 = scmp.eq.s32.totalorder %s21, 0
      %p112 = por %p110, %p111
      %s113 = ssub.s32 %s23, %s30
      %p114 = scmp.eq.s32.totalorder %s113, 0
      %s116 = sadd.s32 %s115, 1
      %s117 = scalar_select %p114, %s115, %s116
      %p120 = pneg %p114
      %p121 = scmp.eq.s32.totalorder %s15, 1
      %p122 = por %p120, %p121
      %p123 = scmp.ne.s32.totalorder %s115, %s118
      %p124 = scmp.eq.s32.totalorder %s15, 0
      %p125 = por %p123, %p124
      %p126 = scmp.ne.s32.totalorder %s115, %s118
      %p127 = scmp.eq.s32.totalorder %s20, 1
      %p128 = por %p126, %p127
      %p129 = scmp.ne.s32.totalorder %s118, %s119
      %p130 = scmp.eq.s32.totalorder %s20, 0
      %p131 = por %p129, %p130
      %p132 = scmp.ne.s32.totalorder %s118, %s119
      %p133 = scmp.eq.s32.totalorder %s21, 1
      %p134 = por %p132, %p133
      %p136 = scmp.ne.s32.totalorder %s119, %s135
      %p137 = scmp.eq.s32.totalorder %s21, 0
      %p138 = por %p136, %p137
      %s139 = ssub.s32 %s22, %s34
      %p140 = scmp.eq.s32.totalorder %s139, 0
      %s142 = sadd.s32 %s141, 1
      %s143 = scalar_select %p140, %s141, %s142
      %p146 = pneg %p140
      %p147 = scmp.eq.s32.totalorder %s15, 1
      %p148 = por %p146, %p147
      %p149 = scmp.ne.s32.totalorder %s141, %s144
      %p150 = scmp.eq.s32.totalorder %s15, 0
      %p151 = por %p149, %p150
      %p152 = scmp.ne.s32.totalorder %s141, %s144
      %p153 = scmp.eq.s32.totalorder %s20, 1
      %p154 = por %p152, %p153
      %p155 = scmp.ne.s32.totalorder %s144, %s145
      %p156 = scmp.eq.s32.totalorder %s20, 0
      %p157 = por %p155, %p156
      %p158 = scmp.ne.s32.totalorder %s144, %s145
      %p159 = scmp.eq.s32.totalorder %s21, 1
      %p160 = por %p158, %p159
      %p162 = scmp.ne.s32.totalorder %s145, %s161
      %p163 = scmp.eq.s32.totalorder %s21, 0
      %p164 = por %p162, %p163
      %p165 = scmp.le.s32.totalorder 1, %s15
      %p166 = scmp.lt.s32.totalorder %s15, 3
      %p167 = pnand %p165, %p166
      %p168 = pneg %p167
      // Predicated region
      $region9: #{tpu_custom_call.1} parent=5 // pred_check
        _
      $region10: #{tpu_custom_call.1} parent=5 // pred_check_branch
        %170 = sbr.rel (%p167) target = $region12
      $region11: #{tpu_custom_call.1} parent=5 // pred_region
        %s171 = ssub.s32 %s15, 1
      $region12: #{tpu_custom_call.1} parent=5 // pred_fallthru
        _
      %p172 = scmp.lt.s32.totalorder %s15, 2
      // Predicated region
      $region13: #{tpu_custom_call.1} parent=5 // pred_check
        %p173 = pneg %p172
      $region14: #{tpu_custom_call.1} parent=5 // pred_check_branch
        %175 = sbr.rel (%p173) target = $region16
      $region15: #{tpu_custom_call.1} parent=5 // pred_region
        // Predicated region
        $region17: #{tpu_custom_call.1} parent=15 // pred_check
          %p176 = pneg %p47
        $region18: #{tpu_custom_call.1} parent=15 // pred_check_branch
          %178 = sbr.rel (%p176) target = $region20
        $region19: #{tpu_custom_call.1} parent=15 // pred_region
          %p179 = scmp.lt.s32.totalorder %s23, 1
          %s180 = scalar_select %p179, %s23, 1
          %s181 = scalar_lea.vmem %s1, %s180
        $region20: #{tpu_custom_call.1} parent=15 // pred_fallthru
          _
        // Predicated region
        $region21: #{tpu_custom_call.1} parent=15 // pred_check
          %p182 = pneg %p73
        $region22: #{tpu_custom_call.1} parent=15 // pred_check_branch
          %184 = sbr.rel (%p182) target = $region24
        $region23: #{tpu_custom_call.1} parent=15 // pred_region
          %s185 = sand.u32 %s63, 1
          %s186 = scalar_lea.sflag [#allocation4], %s185
          %s187 = sand.u32 %s63, 1
          %s188 = smul.addr %s187, 128
          %s189 = scalar_lea.vmem [#allocation3], %s188
          %s191 = ssub.s32 2048, 2048
          %192 = vsyncadd %s186, %s191
          %s193 = smul.addr %s23, 32
          %s194 = smul.addr %s193, 64
          %s195 = scalar_lea.hbm %s2, %s194
          %s196 = sshll.u32 %s189, 4
          %s197 = int_to_ptr.vmem [resolvable:$true] %s196
          %202 = dma.hbm_to_vmem [thread:$0]  %s195, 2048, %s197, %s186, 128, 128, 8
        $region24: #{tpu_custom_call.1} parent=15 // pred_fallthru
          _
        // Predicated region
        $region25: #{tpu_custom_call.1} parent=15 // pred_check
          %p203 = pneg %p99
        $region26: #{tpu_custom_call.1} parent=15 // pred_check_branch
          %205 = sbr.rel (%p203) target = $region28
        $region27: #{tpu_custom_call.1} parent=15 // pred_region
          %p206 = scmp.lt.s32.totalorder %s23, 1
          %s207 = scalar_select %p206, %s23, 1
          %s208 = smul.addr %s207, 2
          %s209 = scalar_lea.vmem %s3, %s208
        $region28: #{tpu_custom_call.1} parent=15 // pred_fallthru
          _
        // Predicated region
        $region29: #{tpu_custom_call.1} parent=15 // pred_check
          %p210 = pneg %p125
        $region30: #{tpu_custom_call.1} parent=15 // pred_check_branch
          %212 = sbr.rel (%p210) target = $region32
        $region31: #{tpu_custom_call.1} parent=15 // pred_region
          %p213 = scmp.lt.s32.totalorder %s23, 1
          %s214 = scalar_select %p213, %s23, 1
          %s215 = smul.addr %s214, 4
          %s216 = scalar_lea.vmem %s4, %s215
        $region32: #{tpu_custom_call.1} parent=15 // pred_fallthru
          _
      $region16: #{tpu_custom_call.1} parent=5 // pred_fallthru
        _
      %p217 = scmp.le.s32.totalorder 1, %s15
      %p218 = scmp.lt.s32.totalorder %s15, 3
      %p219 = pnand %p217, %p218
      %p220 = pneg %p219
      // Predicated region
      $region33: #{tpu_custom_call.1} parent=5 // pred_check
        _
      $region34: #{tpu_custom_call.1} parent=5 // pred_check_branch
        %222 = sbr.rel (%p219) target = $region36
      $region35: #{tpu_custom_call.1} parent=5 // pred_region
        %s223 = ssub.s32 %s15, 1
        %s224 = sand.u32 %s66, 1
        %s225 = scalar_lea.sflag [#allocation4], %s224
        %s226 = sand.u32 %s66, 1
        %s227 = smul.addr %s226, 128
        %s228 = scalar_lea.vmem [#allocation3], %s227
        // Predicated region
        $region37: #{tpu_custom_call.1} parent=35 // pred_check
          %p229 = pneg %p79
        $region38: #{tpu_custom_call.1} parent=35 // pred_check_branch
          %231 = sbr.rel (%p229) target = $region40
        $region39: #{tpu_custom_call.1} parent=35 // pred_region
          %232 = dma.done %s225, 2048
        $region40: #{tpu_custom_call.1} parent=35 // pred_fallthru
          _
        %p233 = scmp.lt.s32.totalorder %s25, 1
        %s234 = scalar_select %p233, %s25, 1
        %s235 = scalar_lea.vmem %s1, %s234
        %p236 = pneg %p53
        %p237 = pneg %p50
        %s238 = sand.u32 %s66, 1
        %s239 = scalar_lea.sflag [#allocation4], %s238
        %s240 = sand.u32 %s66, 1
        %s241 = smul.addr %s240, 128
        %s242 = scalar_lea.vmem [#allocation3], %s241
        %p243 = pneg %p79
        %p244 = pneg %p76
        %p245 = scmp.lt.s32.totalorder %s25, 1
        %s246 = scalar_select %p245, %s25, 1
        %s247 = smul.addr %s246, 2
        %s248 = scalar_lea.vmem %s3, %s247
        %p249 = pneg %p105
        %p250 = pneg %p102
        %p251 = scmp.lt.s32.totalorder %s25, 1
        %s252 = scalar_select %p251, %s25, 1
        %s253 = smul.addr %s252, 4
        %s254 = scalar_lea.vmem %s4, %s253
        %p255 = pneg %p131
        %p256 = pneg %p128
        %p257 = pneg %p157
        %p258 = pneg %p154
        %p259 = scmp.lt.s32.totalorder %s25, 1
        %s260 = scalar_select %p259, %s25, 1
        %s261 = scalar_lea.vmem %s1, %s260
        %p262 = scmp.lt.s32.totalorder %s25, 1
        %s263 = scalar_select %p262, %s25, 1
        %s264 = smul.addr %s263, 2
        %s265 = scalar_lea.vmem %s3, %s264
        %p266 = scmp.lt.s32.totalorder %s25, 1
        %s267 = scalar_select %p266, %s25, 1
        %s268 = smul.addr %s267, 4
        %s269 = scalar_lea.vmem %s4, %s268
        %s270 = smul.u32 2, %s24
        %p272 = scmp.eq.s32.totalorder %s25, 0
        // Predicated region
        $region41: #{tpu_custom_call.1} parent=35 // pred_check
          %p273 = pneg %p272
        $region42: #{tpu_custom_call.1} parent=35 // pred_check_branch
          %275 = sbr.rel (%p273) target = $region44
        $region43: #{tpu_custom_call.1} parent=35 // pred_region
          %s276 = smul.u32 %s24, 2
          $region45: #{tpu_custom_call.1} parent=43
            #allocation7 [shape = 's32[1]{0}', space=sflag, size = 0x4, scoped, tag = 'scoped memory for tpu_custom_call.1']
            %s277 = smul.u32 %s276, 8
            %s278 = smul.addr %s277, 16
            %s279 = scalar_lea.hbm %s0, %s278
            // Predicated region
            $region46: #{tpu_custom_call.1} parent=45 // pred_check
              _
            $region47: #{tpu_custom_call.1} parent=45 // pred_check_branch
              %281 = sbr.rel target = $region49
            $region48: #{tpu_custom_call.1} parent=45 // pred_region
              %282 = sst [smem:[#allocation10]] [#allocation9]
              %283 = sst [smem:[#allocation11]] [#allocation8]
            $region49: #{tpu_custom_call.1} parent=45 // pred_fallthru
              _
            %285 = shalt.err (0)
            %s287 = sshll.u32 [#allocation2], 4
            %s288 = int_to_ptr.vmem [resolvable:$true] %s287
            %290 = dma.hbm_to_vmem [thread:$0]  %s279, 256, %s288, [#allocation7]
            %s291 = smul.u32 2, 8
            %s292 = smul.u32 %s291, 1
            %s293 = sshll.u32 %s292, 4
            %294 = dma.done [#allocation7], %s293
        $region44: #{tpu_custom_call.1} parent=35 // pred_fallthru
          _
        %v295 = vld [vmem:[#allocation2] sm:$0xff]
        %v296 = vld [vmem:[#allocation2 + $0x8] sm:$0xff]
        %v297 = vld [vmem:[%s261] sm:$0x1]
        %v298 = vld [vmem:[%s228] sm:$0xff]
        %v299 = vld [vmem:[%s228 + $0x8] sm:$0xff]
        %v300 = vld [vmem:[%s228 + $0x10] sm:$0xff]
        %v301 = vld [vmem:[%s228 + $0x18] sm:$0xff]
        %v302 = vld [vmem:[%s228 + $0x20] sm:$0xff]
        %v303 = vld [vmem:[%s228 + $0x28] sm:$0xff]
        %v304 = vld [vmem:[%s228 + $0x30] sm:$0xff]
        %v305 = vld [vmem:[%s228 + $0x38] sm:$0xff]
        %v306 = vld [vmem:[%s228 + $0x40] sm:$0xff]
        %v307 = vld [vmem:[%s228 + $0x48] sm:$0xff]
        %v308 = vld [vmem:[%s228 + $0x50] sm:$0xff]
        %v309 = vld [vmem:[%s228 + $0x58] sm:$0xff]
        %v310 = vld [vmem:[%s228 + $0x60] sm:$0xff]
        %v311 = vld [vmem:[%s228 + $0x68] sm:$0xff]
        %v312 = vld [vmem:[%s228 + $0x70] sm:$0xff]
        %v313 = vld [vmem:[%s228 + $0x78] sm:$0xff]
        %v314 = vld [vmem:[%s265] sm:$0x3]
        %v315 = vld [vmem:[%s269] sm:$0xf]
        %v317 = vlaneseq
        %v318 = vshrl.u32 %v317, 7
        %v319 = vsub.s32 0, %v318
        %v320 = vrot.slane %v297, %v319
        %v322 = vmul.f32 %v295, %v320
        %v323 = vmul.f32 %v296, %v320
        %v324 = vxor.u32 %v322, 2147483648
        %v325 = vxor.u32 %v323, 2147483648
        %v326 = vmul.f32 %v324, 1.442695
        %v327 = vpow.pop %v326
        %v328 = vmul.f32 %v325, 1.442695
        %v329 = vpow.pop %v328
        %v330 = vadd.f32 %v327, 1.0
        %v331 = vadd.f32 %v329, 1.0
        %v332 = vrcp.pop %v330
        %v333 = vmul.f32 1.0, %v332
        %v334 = vrcp.pop %v331
        %v335 = vmul.f32 1.0, %v334
        %v336 = vmul.f32 %v295, 1.442695
        %v337 = vpow.pop %v336
        %v338 = vmul.f32 %v296, 1.442695
        %v339 = vpow.pop %v338
        %v340 = vmul.f32 %v337, %v295
        %v341 = vmul.f32 %v339, %v296
        %342 = vadd.xlane.f32.xlu0 %v333
        %v343 = vpop.xlane.xlu0 %342
        %344 = vadd.xlane.f32.xlu0 %v335
        %v345 = vpop.xlane.xlu0 %344
        %v346 = vrcp.pop 128.0
        %v347 = vmul.f32 %v343, %v346
        %v348 = vmul.f32 %v345, %v346
        %349 = vadd.xlane.f32.xlu0 %v337
        %v350 = vpop.xlane.xlu0 %349
        %351 = vadd.xlane.f32.xlu0 %v339
        %v352 = vpop.xlane.xlu0 %351
        %v353 = vlaneseq
        %v354 = vshrl.u32 %v353, 7
        %v355 = vrot.slane %v340, 7
        %v356 = vrot.slane %v341, 7
        %vm357 = vcmp.lt.s32.totalorder %v354, 1
        %v358 = vsel %vm357, %v355, %v356
        %v359 = vsel %vm357, %v356, %v355
        %vm360 = vcmp.ge.s32.totalorder %v354, 1
        %v361 = vsel %vm360, 1, 0
        %vm362 = vcmp.eq.s32.totalorder %v361, 1
        %v363 = vsel %vm362, %v359, 0.0
        %v364 = vsel %vm362, %v358, 0.0
        %v365 = vmul.f32 %v333, %v363
        %v366 = vmul.f32 %v335, %v364
        %v367 = vadd.f32 %v365, %v340
        %v368 = vadd.f32 %v366, %v341
        %v369 = vrot.slane %v333, 7
        %v370 = vrot.slane %v335, 7
        %v371 = vsel %vm357, %v369, %v370
        %v372 = vsel %vm357, %v370, %v369
        %v373 = vsel %vm362, %v372, 1.0
        %v374 = vsel %vm362, %v371, 1.0
        %v375 = vmul.f32 %v333, %v373
        %v376 = vmul.f32 %v335, %v374
        %v377 = vrot.slane %v350, 7
        %v378 = vrot.slane %v352, 7
        %v379 = vsel %vm357, %v377, %v378
        %v380 = vsel %vm357, %v378, %v377
        %v381 = vsel %vm360, %v380, 0.0
        %v382 = vsel %vm360, %v379, 0.0
        %v383 = vmul.f32 %v347, %v381
        %v384 = vmul.f32 %v348, %v382
        %v385 = vadd.f32 %v383, %v350
        %v386 = vadd.f32 %v384, %v352
        %v387 = vrot.slane %v347, 7
        %v388 = vrot.slane %v348, 7
        %v389 = vsel %vm357, %v387, %v388
        %v390 = vsel %vm357, %v388, %v387
        %v391 = vsel %vm360, %v390, 1.0
        %v392 = vsel %vm360, %v389, 1.0
        %v393 = vmul.f32 %v347, %v391
        %v394 = vmul.f32 %v348, %v392
        %v395 = vrot.slane %v367, 6
        %v396 = vrot.slane %v368, 6
        %vm397 = vcmp.lt.s32.totalorder %v354, 2
        %v398 = vsel %vm397, %v395, %v396
        %v399 = vsel %vm397, %v396, %v395
        %vm400 = vcmp.ge.s32.totalorder %v354, 2
        %v401 = vsel %vm400, 1, 0
        %vm402 = vcmp.eq.s32.totalorder %v401, 1
        %v403 = vsel %vm402, %v399, 0.0
        %v404 = vsel %vm402, %v398, 0.0
        %v405 = vmul.f32 %v375, %v403
        %v406 = vmul.f32 %v376, %v404
        %v407 = vadd.f32 %v405, %v367
        %v408 = vadd.f32 %v406, %v368
        %v409 = vrot.slane %v375, 6
        %v410 = vrot.slane %v376, 6
        %v411 = vsel %vm397, %v409, %v410
        %v412 = vsel %vm397, %v410, %v409
        %v413 = vsel %vm402, %v412, 1.0
        %v414 = vsel %vm402, %v411, 1.0
        %v415 = vmul.f32 %v375, %v413
        %v416 = vmul.f32 %v376, %v414
        %v417 = vrot.slane %v385, 6
        %v418 = vrot.slane %v386, 6
        %v419 = vsel %vm397, %v417, %v418
        %v420 = vsel %vm397, %v418, %v417
        %v421 = vsel %vm400, %v420, 0.0
        %v422 = vsel %vm400, %v419, 0.0
        %v423 = vmul.f32 %v393, %v421
        %v424 = vmul.f32 %v394, %v422
        %v425 = vadd.f32 %v423, %v385
        %v426 = vadd.f32 %v424, %v386
        %v427 = vrot.slane %v393, 6
        %v428 = vrot.slane %v394, 6
        %v429 = vsel %vm397, %v427, %v428
        %v430 = vsel %vm397, %v428, %v427
        %v431 = vsel %vm400, %v430, 1.0
        %v432 = vsel %vm400, %v429, 1.0
        %v433 = vmul.f32 %v393, %v431
        %v434 = vmul.f32 %v394, %v432
        %v435 = vrot.slane %v407, 4
        %v436 = vrot.slane %v408, 4
        %vm437 = vcmp.lt.s32.totalorder %v354, 4
        %v438 = vsel %vm437, %v435, %v436
        %v439 = vsel %vm437, %v436, %v435
        %vm440 = vcmp.ge.s32.totalorder %v354, 4
        %v441 = vsel %vm440, 1, 0
        %vm442 = vcmp.eq.s32.totalorder %v441, 1
        %v443 = vsel %vm442, %v439, 0.0
        %v444 = vsel %vm442, %v438, 0.0
        %v445 = vmul.f32 %v415, %v443
        %v446 = vmul.f32 %v416, %v444
        %v447 = vadd.f32 %v445, %v407
        %v448 = vadd.f32 %v446, %v408
        %v449 = vrot.slane %v425, 4
        %v450 = vrot.slane %v426, 4
        %v451 = vsel %vm437, %v449, %v450
        %v452 = vsel %vm437, %v450, %v449
        %v453 = vsel %vm440, %v452, 0.0
        %v454 = vsel %vm440, %v451, 0.0
        %v455 = vmul.f32 %v433, %v453
        %v456 = vmul.f32 %v434, %v454
        %v457 = vadd.f32 %v455, %v425
        %v458 = vadd.f32 %v456, %v426
        %v459 = vadd.f32 %v457, 1e-08
        %v460 = vadd.f32 %v458, 1e-08
        %v461 = vrcp.pop %v459
        %v462 = vrcp.pop %v460
        %464 = vset.pattern.permute.xlu0 0
        %465 = vperm.xlu0 %464, %v461
        %v466 = vpop.permute.xlu0 %465
        %469 = vset.pattern.permute.xlu0 0
        %470 = vperm.xlu0 %469, %v462
        %v471 = vpop.permute.xlu0 %470
        %v473 = vmul.f32 %v447, %v466
        %v474 = vmul.f32 %v448, %v471
        %475 = vadd.xlane.f32.xlu0 %v473
        %v476 = vpop.xlane.xlu0 %475
        %477 = vadd.xlane.f32.xlu0 %v474
        %v478 = vpop.xlane.xlu0 %477
        %v479 = vmul.f32 %v476, %v346
        %v480 = vmul.f32 %v478, %v346
        %v481 = vsub.f32 %v473, %v479
        %v482 = vsub.f32 %v474, %v480
        %v483 = vmul.f32 %v481, %v481
        %v484 = vmul.f32 %v482, %v482
        %485 = vadd.xlane.f32.xlu0 %v483
        %v486 = vpop.xlane.xlu0 %485
        %487 = vadd.xlane.f32.xlu0 %v484
        %v488 = vpop.xlane.xlu0 %487
        %v489 = vmul.f32 %v486, %v346
        %v490 = vmul.f32 %v488, %v346
        %v491 = vadd.f32 %v489, 1e-05
        %v492 = vadd.f32 %v490, 1e-05
        %v493 = vrsqrt.pop %v491
        %v494 = vrsqrt.pop %v492
        %v495 = vmul.f32 %v481, %v493
        %v496 = vmul.f32 %v482, %v494
        %v497 = vlaneseq
        %v498 = vshrl.u32 %v497, 7
        %v499 = vsub.s32 0, %v498
        %v500 = vrot.slane %v315, %v499
        %v501 = vmul.f32 %v495, %v500
        %v502 = vmul.f32 %v496, %v500
        %v503 = vlaneseq
        %v504 = vshrl.u32 %v503, 7
        %v505 = vsub.s32 1, %v504
        %v506 = vrot.slane %v315, %v505
        %v507 = vadd.f32 %v501, %v506
        %v508 = vadd.f32 %v502, %v506
        %v509 = vpack.c.bf16 %v508, %v507
        %v511 = vlaneseq
        %v512 = vshrl.u32 %v511, 7
        %v513 = vsub.s32 0, %v512
        %v514 = vrot.slane %v314, %v513
        %v515 = vlaneseq
        %v516 = vshrl.u32 %v515, 7
        %v517 = vsub.s32 1, %v516
        %v518 = vrot.slane %v314, %v517
        %v537 = vunpack.c.l.b16 %v298
        %v538 = vunpack.c.h.b16 %v298
        %v539 = vunpack.c.l.b16 %v299
        %v540 = vunpack.c.h.b16 %v299
        %v541 = vunpack.c.l.b16 %v300
        %v542 = vunpack.c.h.b16 %v300
        %v543 = vunpack.c.l.b16 %v301
        %v544 = vunpack.c.h.b16 %v301
        %v545 = vunpack.c.l.b16 %v302
        %v546 = vunpack.c.h.b16 %v302
        %v547 = vunpack.c.l.b16 %v303
        %v548 = vunpack.c.h.b16 %v303
        %v549 = vunpack.c.l.b16 %v304
        %v550 = vunpack.c.h.b16 %v304
        %v551 = vunpack.c.l.b16 %v305
        %v552 = vunpack.c.h.b16 %v305
        %v553 = vunpack.c.l.b16 %v306
        %v554 = vunpack.c.h.b16 %v306
        %v555 = vunpack.c.l.b16 %v307
        %v556 = vunpack.c.h.b16 %v307
        %v557 = vunpack.c.l.b16 %v308
        %v558 = vunpack.c.h.b16 %v308
        %v559 = vunpack.c.l.b16 %v309
        %v560 = vunpack.c.h.b16 %v309
        %v561 = vunpack.c.l.b16 %v310
        %v562 = vunpack.c.h.b16 %v310
        %v563 = vunpack.c.l.b16 %v311
        %v564 = vunpack.c.h.b16 %v311
        %v565 = vunpack.c.l.b16 %v312
        %v566 = vunpack.c.h.b16 %v312
        %v567 = vunpack.c.l.b16 %v313
        %v568 = vunpack.c.h.b16 %v313
        %v569 = vpack.c.b16 %v539, %v537
        %v570 = vpack.c.b16 %v540, %v538
        %v571 = vpack.c.b16 %v543, %v541
        %v572 = vpack.c.b16 %v544, %v542
        %v573 = vpack.c.b16 %v547, %v545
        %v574 = vpack.c.b16 %v548, %v546
        %v575 = vpack.c.b16 %v551, %v549
        %v576 = vpack.c.b16 %v552, %v550
        %v577 = vpack.c.b16 %v555, %v553
        %v578 = vpack.c.b16 %v556, %v554
        %v579 = vpack.c.b16 %v559, %v557
        %v580 = vpack.c.b16 %v560, %v558
        %v581 = vpack.c.b16 %v563, %v561
        %v582 = vpack.c.b16 %v564, %v562
        %v583 = vpack.c.b16 %v567, %v565
        %v584 = vpack.c.b16 %v568, %v566
        %601 = vmatprep.subr.bf16.mxu0 %v570
        %602 = vmatpush1.bf16.msra.mxu0 %v569
        %603 = vmatprep.subr.bf16.mxu0 %v572
        %604 = vmatpush1.bf16.msra.mxu0 %v571
        %605 = vmatprep.subr.bf16.mxu0 %v574
        %606 = vmatpush1.bf16.msra.mxu0 %v573
        %607 = vmatprep.subr.bf16.mxu0 %v576
        %608 = vmatpush1.bf16.msra.mxu0 %v575
        %609 = vmatprep.subr.bf16.mxu0 %v578
        %610 = vmatpush1.bf16.msra.mxu0 %v577
        %611 = vmatprep.subr.bf16.mxu0 %v580
        %612 = vmatpush1.bf16.msra.mxu0 %v579
        %613 = vmatprep.subr.bf16.mxu0 %v582
        %614 = vmatpush1.bf16.msra.mxu0 %v581
        %615 = vmatprep.subr.bf16.mxu0 %v584
        %616 = vmatpush1.bf16.msra.mxu0 %v583
        %617 = vmatprep.subr.bf16.mxu0 0
        %618 = vmatpush1.bf16.msra.mxu0 0
        %619 = vmatprep.subr.bf16.mxu0 0
        %620 = vmatpush1.bf16.msra.mxu0 0
        %621 = vmatprep.subr.bf16.mxu0 0
        %622 = vmatpush1.bf16.msra.mxu0 0
        %623 = vmatprep.subr.bf16.mxu0 0
        %624 = vmatpush1.bf16.msra.mxu0 0
        %625 = vmatprep.subr.bf16.mxu0 0
        %626 = vmatpush1.bf16.msra.mxu0 0
        %627 = vmatprep.subr.bf16.mxu0 0
        %628 = vmatpush1.bf16.msra.mxu0 0
        %629 = vmatprep.subr.bf16.mxu0 0
        %630 = vmatpush1.bf16.msra.mxu0 0
        %631 = vmatprep.subr.bf16.mxu0 0
        %632 = vmatpush1.bf16.msra.mxu0 0
        %633 = vmatprep.mubr.bf16.mxu0 0
        %634 = vmatmul.mubr.bf16.gmra.mrb[0].mxu0 %v509
        %v635 = vpop.f32.mrb[0].mxu0
        %v636 = vadd.f32 %v514, %v635
        %v637 = vpop.f32.mrb[0].mxu0
        %v638 = vadd.f32 %v518, %v637
        %v639 = vpop.f32.mrb[0].mxu0
        %v640 = vadd.f32 %v514, %v639
        %v641 = vpop.f32.mrb[0].mxu0
        %v642 = vadd.f32 %v518, %v641
        %643 = vdwg.mxu0
        %v644 = vxor.u32 %v636, 2147483648
        %v645 = vxor.u32 %v640, 2147483648
        %v646 = vmul.f32 %v644, 1.442695
        %v647 = vpow.pop %v646
        %v648 = vmul.f32 %v645, 1.442695
        %v649 = vpow.pop %v648
        %v650 = vadd.f32 %v647, 1.0
        %v651 = vadd.f32 %v649, 1.0
        %v652 = vrcp.pop %v650
        %v653 = vmul.f32 1.0, %v652
        %v654 = vrcp.pop %v651
        %v655 = vmul.f32 1.0, %v654
        %v656 = vmul.f32 %v653, %v638
        %v657 = vmul.f32 %v655, %v642
        %658 = vadd.xlane.f32.xlu0 %v656
        %v659 = vpop.xlane.xlu0 %658
        %660 = vadd.xlane.f32.xlu0 %v657
        %v661 = vpop.xlane.xlu0 %660
        %v662 = vmul.f32 %v659, %v346
        %v663 = vmul.f32 %v661, %v346
        %v664 = vsub.f32 %v656, %v662
        %v665 = vsub.f32 %v657, %v663
        %v666 = vmul.f32 %v664, %v664
        %v667 = vmul.f32 %v665, %v665
        %668 = vadd.xlane.f32.xlu0 %v666
        %v669 = vpop.xlane.xlu0 %668
        %670 = vadd.xlane.f32.xlu0 %v667
        %v671 = vpop.xlane.xlu0 %670
        %v672 = vmul.f32 %v669, %v346
        %v673 = vmul.f32 %v671, %v346
        %v674 = vadd.f32 %v672, 1e-05
        %v675 = vadd.f32 %v673, 1e-05
        %v676 = vrsqrt.pop %v674
        %v677 = vrsqrt.pop %v675
        %v678 = vmul.f32 %v664, %v676
        %v679 = vmul.f32 %v665, %v677
        %v680 = vlaneseq
        %v681 = vshrl.u32 %v680, 7
        %v682 = vsub.s32 2, %v681
        %v683 = vrot.slane %v315, %v682
        %v684 = vmul.f32 %v678, %v683
        %v685 = vmul.f32 %v679, %v683
        %v686 = vlaneseq
        %v687 = vshrl.u32 %v686, 7
        %v688 = vsub.s32 3, %v687
        %v689 = vrot.slane %v315, %v688
        %v690 = vadd.f32 %v684, %v689
        %v691 = vadd.f32 %v685, %v689
        %v692 = vadd.f32 %v295, %v690
        %v693 = vadd.f32 %v296, %v691
        %694 = vst [vmem:[#allocation2] sm:$0xff] %v692
        %695 = vst [vmem:[#allocation2 + $0x8] sm:$0xff] %v693
        %p696 = scmp.eq.s32.totalorder %s25, 1
        // Predicated region
        $region50: #{tpu_custom_call.1} parent=35 // pred_check
          %p697 = pneg %p696
        $region51: #{tpu_custom_call.1} parent=35 // pred_check_branch
          %699 = sbr.rel (%p697) target = $region53
        $region52: #{tpu_custom_call.1} parent=35 // pred_region
          %v700 = vrot.slane %v692, 4
          %v701 = vadd.f32 %v692, %v700
          %v702 = vrot.slane %v701, 2
          %v703 = vadd.f32 %v701, %v702
          %v704 = vrot.slane %v703, 1
          %v705 = vadd.f32 %v703, %v704
          %v706 = vrot.slane %v693, 4
          %v707 = vadd.f32 %v693, %v706
          %v708 = vrot.slane %v707, 2
          %v709 = vadd.f32 %v707, %v708
          %v710 = vrot.slane %v709, 1
          %v711 = vadd.f32 %v709, %v710
          %v712 = vrcp.pop 8.0
          %v713 = vmul.f32 %v705, %v712
          %v714 = vmul.f32 %v711, %v712
          %715 = vst [vmem:[#allocation6] sm:$0x1] %v713
          %716 = vst [vmem:[#allocation6 + $0x1] sm:$0x1] %v714
        $region53: #{tpu_custom_call.1} parent=35 // pred_fallthru
          _
        // Predicated region
        $region54: #{tpu_custom_call.1} parent=35 // pred_check
          %p717 = pneg %p154
        $region55: #{tpu_custom_call.1} parent=35 // pred_check_branch
          %719 = sbr.rel (%p717) target = $region57
        $region56: #{tpu_custom_call.1} parent=35 // pred_region
          %s720 = smul.u32 2, %s24
          %s722 = ssub.s32 32, 32
          %723 = vsyncadd [#allocation5], %s722
          %s724 = smul.addr %s720, 16
          %s725 = scalar_lea.hbm %s5, %s724
          %s726 = sshll.u32 [#allocation6], 4
          %s727 = int_to_ptr.vmem [resolvable:$true] %s726
          %732 = dma.vmem_to_hbm [thread:$0]  %s727, 32, %s725, [#allocation5], 16, 16, 1
        $region57: #{tpu_custom_call.1} parent=35 // pred_fallthru
          _
        // Predicated region
        $region58: #{tpu_custom_call.1} parent=35 // pred_check
          %p733 = pneg %p154
        $region59: #{tpu_custom_call.1} parent=35 // pred_check_branch
          %735 = sbr.rel (%p733) target = $region61
        $region60: #{tpu_custom_call.1} parent=35 // pred_region
          %736 = dma.done [#allocation5], 32
        $region61: #{tpu_custom_call.1} parent=35 // pred_fallthru
          _
      $region36: #{tpu_custom_call.1} parent=5 // pred_fallthru
        _
      %p737 = scmp.le.s32.totalorder 2, %s15
      // Predicated region
      $region62: #{tpu_custom_call.1} parent=5 // pred_check
        %p738 = pneg %p737
      $region63: #{tpu_custom_call.1} parent=5 // pred_check_branch
        %740 = sbr.rel (%p738) target = $region65
      $region64: #{tpu_custom_call.1} parent=5 // pred_region
        %s741 = ssub.s32 %s15, 2
      $region65: #{tpu_custom_call.1} parent=5 // pred_fallthru
        _
    $region6: #{tpu_custom_call.1} parent=1 // loop_footer
      %s19 = sadd.s32 1, %s15
    $region7: #{tpu_custom_call.1} parent=1 // loop_footer_branch
      %14 = sbr.rel target = $region3
    $region8: #{tpu_custom_call.1} parent=1 // loop_exit
      _
    %742 = vsyncpa [#allocation4], 1
    %s743 = scalar_lea.sflag [#allocation4], 1
    %744 = vsyncpa %s743, 1
    %745 = vsyncpa [#allocation5], 1
    %s746 = scalar_lea.sflag [#allocation5], 1
    %747 = vsyncpa %s746, 1

</llo_original>
